<compile_context>
chip_gen: v6e
topology: v6e:2x2x1
jax: 0.10.0
libtpu: 0.0.40
codegen_flags: <defaults>
</compile_context>

<pallas_src>
import jax
import jax.numpy as jnp
from jax.experimental import pallas as pl
from jax.experimental.pallas import tpu as pltpu


def _concat_bottleneck_kernel(x_ref, r_ref, wxT_ref, wrT_ref, b_ref, o_ref):
    # Refs: x/r/o are (1, C, t) lane-dense tiles; weights (C, C); bias (C, 1).
    x = x_ref[0]                                           # (C, t) sites on lanes
    r = r_ref[0]                                           # (C, t)
    acc = jnp.dot(wxT_ref[...], x, preferred_element_type=jnp.float32)
    acc = acc + jnp.dot(wrT_ref[...], r, preferred_element_type=jnp.float32)
    acc = acc + b_ref[...]                                 # (C, 1) broadcasts over sites
    o_ref[0] = acc.astype(o_ref.dtype)


def concat_connection_forward(x_ncdhw, r_ncdhw, w, b, *, site_tile=8192):
    """ConcatConnection forward. x/r: [N,C,D,H,W]; w: [2C,C]; b: [C] -> [N,C,D,H,W]."""
    N, C, D, H, W = x_ncdhw.shape
    assert r_ncdhw.shape == x_ncdhw.shape
    assert w.shape == (2 * C, C) and b.shape == (C,)
    S = D * H * W

    # Free reshapes (no data movement): stay in the native channels-first layout.
    x3 = x_ncdhw.reshape(N, C, S)
    r3 = r_ncdhw.reshape(N, C, S)

    # Split + transpose the 1x1x1 conv weight for the channels-first matmul.
    wxT = jnp.transpose(w[:C])      # (C, C), applied to x features
    wrT = jnp.transpose(w[C:])      # (C, C), applied to residual features
    b2 = b.reshape(C, 1)

    # Lane-dense site tile: multiple of 128, clamped to the full site extent.
    t = S if S <= site_tile else site_tile
    grid = (N, pl.cdiv(S, t))

    # VMEM budget: double-buffered x/r/out tiles + resident weights, with
    # headroom; kept well under v7x's 64 MiB physical VMEM.
    in_itemsize = jnp.dtype(x3.dtype).itemsize
    w_itemsize = jnp.dtype(w.dtype).itemsize
    est = 2 * 3 * C * t * in_itemsize + 2 * (2 * C * C + C) * w_itemsize
    vmem_limit = int(min(max(4 * est, 16 << 20), 56 << 20))

    out3 = pl.pallas_call(
        _concat_bottleneck_kernel,
        out_shape=jax.ShapeDtypeStruct((N, C, S), x3.dtype),
        grid_spec=pltpu.PrefetchScalarGridSpec(
            num_scalar_prefetch=0,
            grid=grid,
            in_specs=[
                pl.BlockSpec((1, C, t), lambda n, i: (n, 0, i)),   # x tile
                pl.BlockSpec((1, C, t), lambda n, i: (n, 0, i)),   # residual tile
                pl.BlockSpec((C, C), lambda n, i: (0, 0)),         # W[:C].T (resident)
                pl.BlockSpec((C, C), lambda n, i: (0, 0)),         # W[C:].T (resident)
                pl.BlockSpec((C, 1), lambda n, i: (0, 0)),         # bias    (resident)
            ],
            out_specs=pl.BlockSpec((1, C, t), lambda n, i: (n, 0, i)),
        ),
        compiler_params=pltpu.CompilerParams(
            dimension_semantics=("parallel", "parallel"),
            vmem_limit_bytes=vmem_limit,
        ),
    )(x3, r3, wxT, wrT, b2)

    return out3.reshape(N, C, D, H, W)


if __name__ == "__main__":
    # Small shapes consistent with the module: 3-D sparse conv, inplanes channels.
    batch, inplanes, spatial = 2, 16, 8          # N=2, C=16, D=H=W=8 -> S=512 sites/sample
    N, C, D, H, W = batch, inplanes, spatial, spatial, spatial

    key = jax.random.PRNGKey(0)
    kx, kr, kw, kb = jax.random.split(key, 4)

    x = jax.random.normal(kx, (N, C, D, H, W), dtype=jnp.float32)
    residual = jax.random.normal(kr, (N, C, D, H, W), dtype=jnp.float32)

    # SubmanifoldConvolution params: W [2C, C], bias [C] (params.bias=True).
    fan_in = 2 * C
    w = jax.random.normal(kw, (2 * C, C), dtype=jnp.float32) / jnp.sqrt(fan_in)
    b = jax.random.normal(kb, (C,), dtype=jnp.float32) * 0.01

    out = jax.block_until_ready(concat_connection_forward(x, residual, w, b))

    # Pure-JAX reference: per-site channel concat, then 1x1x1 conv (matmul).
    x_feat = jnp.transpose(x, (0, 2, 3, 4, 1)).reshape(-1, C)
    r_feat = jnp.transpose(residual, (0, 2, 3, 4, 1)).reshape(-1, C)
    cat = jnp.concatenate([x_feat, r_feat], axis=-1)            # [M, 2C]
    ref_feat = cat @ w + b
    ref = jnp.transpose(ref_feat.reshape(N, D, H, W, C), (0, 4, 1, 2, 3))

    assert out.shape == (N, C, D, H, W)
    assert jnp.allclose(out, ref, atol=1e-5, rtol=1e-5)
    print("KERNEL_OK")
</pallas_src>

<mosaic_0001>
module attributes {stable_mosaic.version = 11 : i64} {
  func.func @_concat_bottleneck_kernel(%arg0: i32, %arg1: i32, %arg2: memref<1x16x512xf32, #tpu.memory_space<vmem>>, %arg3: memref<1x16x512xf32, #tpu.memory_space<vmem>>, %arg4: memref<16x16xf32, #tpu.memory_space<vmem>>, %arg5: memref<16x16xf32, #tpu.memory_space<vmem>>, %arg6: memref<16x1xf32, #tpu.memory_space<vmem>>, %arg7: memref<1x16x512xf32, #tpu.memory_space<vmem>>) attributes {dimension_semantics = [#tpu.dimension_semantics<parallel>, #tpu.dimension_semantics<parallel>], iteration_bounds = array<i64: 2, 1>, scalar_prefetch = 0 : i64, scratch_operands = 0 : i64, tpu.core_type = #tpu.core_type<tc>, window_params = [{transform_indices = @transform_0, window_bounds = array<i64: 1, 16, 512>}, {transform_indices = @transform_1, window_bounds = array<i64: 1, 16, 512>}, {pipeline_mode = #tpu.pipeline_mode<synchronous>, transform_indices = @transform_2, window_bounds = array<i64: 16, 16>}, {pipeline_mode = #tpu.pipeline_mode<synchronous>, transform_indices = @transform_3, window_bounds = array<i64: 16, 16>}, {pipeline_mode = #tpu.pipeline_mode<synchronous>, transform_indices = @transform_4, window_bounds = array<i64: 16, 1>}, {transform_indices = @transform_5, window_bounds = array<i64: 1, 16, 512>}]} {
    %c0 = arith.constant 0 : index
    %c0_0 = arith.constant 0 : index
    %c0_1 = arith.constant 0 : index
    %0 = vector.load %arg2[%c0, %c0_0, %c0_1] : memref<1x16x512xf32, #tpu.memory_space<vmem>>, vector<1x16x512xf32>
    %1 = vector.shape_cast %0 : vector<1x16x512xf32> to vector<16x512xf32>
    %c0_2 = arith.constant 0 : index
    %c0_3 = arith.constant 0 : index
    %c0_4 = arith.constant 0 : index
    %2 = vector.load %arg3[%c0_2, %c0_3, %c0_4] : memref<1x16x512xf32, #tpu.memory_space<vmem>>, vector<1x16x512xf32>
    %3 = vector.shape_cast %2 : vector<1x16x512xf32> to vector<16x512xf32>
    %c0_5 = arith.constant 0 : index
    %c0_6 = arith.constant 0 : index
    %4 = vector.load %arg4[%c0_5, %c0_6] : memref<16x16xf32, #tpu.memory_space<vmem>>, vector<16x16xf32>
    %cst = arith.constant dense<0.000000e+00> : vector<16x512xf32>
    %5 = tpu.matmul %4, %1, %cst {dimension_numbers = #tpu.dot_dimension_numbers<[1], [0], [0], [1], [0, 0, 1, 1], [], []>} : vector<16x16xf32>, vector<16x512xf32>, vector<16x512xf32> -> vector<16x512xf32>
    %c0_7 = arith.constant 0 : index
    %c0_8 = arith.constant 0 : index
    %6 = vector.load %arg5[%c0_7, %c0_8] : memref<16x16xf32, #tpu.memory_space<vmem>>, vector<16x16xf32>
    %cst_9 = arith.constant dense<0.000000e+00> : vector<16x512xf32>
    %7 = tpu.matmul %6, %3, %cst_9 {dimension_numbers = #tpu.dot_dimension_numbers<[1], [0], [0], [1], [0, 0, 1, 1], [], []>} : vector<16x16xf32>, vector<16x512xf32>, vector<16x512xf32> -> vector<16x512xf32>
    %8 = arith.addf %5, %7 : vector<16x512xf32>
    %c0_10 = arith.constant 0 : index
    %c0_11 = arith.constant 0 : index
    %9 = vector.load %arg6[%c0_10, %c0_11] : memref<16x1xf32, #tpu.memory_space<vmem>>, vector<16x1xf32>
    %10 = vector.broadcast %9 : vector<16x1xf32> to vector<16x512xf32>
    %11 = arith.addf %8, %10 : vector<16x512xf32>
    %c0_12 = arith.constant 0 : index
    %c0_13 = arith.constant 0 : index
    %c0_14 = arith.constant 0 : index
    %12 = vector.load %arg7[%c0_12, %c0_13, %c0_14] : memref<1x16x512xf32, #tpu.memory_space<vmem>>, vector<1x16x512xf32>
    %13 = vector.shape_cast %12 : vector<1x16x512xf32> to vector<16x512xf32>
    %14 = vector.shape_cast %11 : vector<16x512xf32> to vector<1x16x512xf32>
    tpu.vector_store %arg7[%c0_12, %c0_13, %c0_14], %14 {strides = array<i32>} : memref<1x16x512xf32, #tpu.memory_space<vmem>>, vector<1x16x512xf32>,
    return
  }
  func.func @transform_0(%arg0: i32, %arg1: i32) -> (i32, i32, i32) {
    %c0_i32 = arith.constant 0 : i32
    %c0_i32_0 = arith.constant 0 : i32
    return %arg0, %c0_i32, %arg1 : i32, i32, i32
  }
  func.func @transform_1(%arg0: i32, %arg1: i32) -> (i32, i32, i32) {
    %c0_i32 = arith.constant 0 : i32
    %c0_i32_0 = arith.constant 0 : i32
    return %arg0, %c0_i32, %arg1 : i32, i32, i32
  }
  func.func @transform_2(%arg0: i32, %arg1: i32) -> (i32, i32) {
    %c0_i32 = arith.constant 0 : i32
    %c0_i32_0 = arith.constant 0 : i32
    %c0_i32_1 = arith.constant 0 : i32
    return %c0_i32, %c0_i32_0 : i32, i32
  }
  func.func @transform_3(%arg0: i32, %arg1: i32) -> (i32, i32) {
    %c0_i32 = arith.constant 0 : i32
    %c0_i32_0 = arith.constant 0 : i32
    %c0_i32_1 = arith.constant 0 : i32
    return %c0_i32, %c0_i32_0 : i32, i32
  }
  func.func @transform_4(%arg0: i32, %arg1: i32) -> (i32, i32) {
    %c0_i32 = arith.constant 0 : i32
    %c0_i32_0 = arith.constant 0 : i32
    %c0_i32_1 = arith.constant 0 : i32
    return %c0_i32, %c0_i32_0 : i32, i32
  }
  func.func @transform_5(%arg0: i32, %arg1: i32) -> (i32, i32, i32) {
    %c0_i32 = arith.constant 0 : i32
    %c0_i32_0 = arith.constant 0 : i32
    return %arg0, %c0_i32, %arg1 : i32, i32, i32
  }
}

</mosaic_0001>

<llo_original>
// kernel: tpu_custom_call.1
$region0: #{tpu_custom_call.1}
  #allocation0 [shape = 'u32[]', space=smem, size = 0x4, offset = 0x4, fixed_abs, tag = 'smem constant byte address 0x4 - core index']
  #allocation1 [shape = 'u32[144,128]{1,0:T(1,128)}', space=vmem, size = 0x12000, scoped, tag = 'internal scratch']
  %s0 = inlined_call_operand.hbm [shape: f32[2,16,512], index: 0, kind: input, shape index: {}]
  %s1 = inlined_call_operand.hbm [shape: f32[2,16,512], index: 1, kind: input, shape index: {}]
  %s2 = inlined_call_operand.vmem [shape: f32[16,16], index: 2, kind: input, shape index: {}]
  %s3 = inlined_call_operand.hbm [shape: f32[16,16], index: 3, kind: input, shape index: {}]
  %s4 = inlined_call_operand.vmem [shape: f32[16,1], index: 4, kind: input, shape index: {}]
  %s5 = inlined_call_operand.hbm [shape: f32[2,16,512], index: 5, kind: output, shape index: {}]
  %s6 = sld [smem:[#allocation0]]
  $region65: #{tpu_custom_call.1} parent=0
    _
  %s8 = ssub.s32 1, %s6
  %s9 = scalar_select 0, %s8, %s6
  $region1: #{tpu_custom_call.1} parent=0
    #allocation2 [shape = 'u8[65536]{0}', space=vmem, size = 0x10000, scoped, tag = 'input window, operand 0']
    #allocation3 [shape = 's32[2]{0}', space=sflag, size = 0x8, scoped, tag = 'scoped memory for tpu_custom_call.1']
    #allocation4 [shape = 's32[2]{0}', space=sflag, size = 0x8, scoped, tag = 'scoped memory for tpu_custom_call.1']
    #allocation5 [shape = 'u8[65536]{0}', space=vmem, size = 0x10000, scoped, tag = 'input window, operand 1']
    #allocation6 [shape = 's32[2]{0}', space=sflag, size = 0x8, scoped, tag = 'scoped memory for tpu_custom_call.1']
    #allocation7 [shape = 'u8[8192]{0}', space=vmem, size = 0x2000, scoped, tag = 'input window, operand 3, single buffered']
    #allocation8 [shape = 'u8[65536]{0}', space=vmem, size = 0x10000, scoped, tag = 'output window, operand 0']
    %10 = vsyncpa [#allocation3], 0
    %s11 = scalar_lea.sflag [#allocation3], 1
    %12 = vsyncpa %s11, 0
    %13 = vsyncpa [#allocation6], 0
    %s14 = scalar_lea.sflag [#allocation6], 1
    %15 = vsyncpa %s14, 0
    %16 = vsyncpa [#allocation4], 0
    %s17 = scalar_lea.sflag [#allocation4], 1
    %18 = vsyncpa %s17, 0
    loop: start=0, step=1, limit=4
    $region2: #{tpu_custom_call.1} parent=1 // loop_pre_header
      _
    $region3: #{tpu_custom_call.1} parent=1 // loop_header
      %s20 = sphi 0, %s24
      %p21 = scmp.ge.s32.totalorder %s20, 4
      %s27 = sphi 0, %s39
      %s28 = sphi 0, %s35
      %s29 = sphi 0, %s27
      %s30 = sphi 0, %s28
      %s31 = sphi 0, %s29
      %s32 = sphi 0, %s30
      %s44 = sphi 0, %s46
      %s47 = sphi 0, %s44
      %s48 = sphi 0, %s47
      %s64 = sphi 0, %s48
      %s72 = sphi 0, %s74
      %s75 = sphi 0, %s72
      %s76 = sphi 0, %s75
      %s92 = sphi 0, %s76
      %s96 = sphi 0, %s96
      %s98 = sphi 0, %s96
      %s99 = sphi 0, %s98
      %s113 = sphi 0, %s99
      %s117 = sphi 0, %s117
      %s119 = sphi 0, %s117
      %s120 = sphi 0, %s119
      %s134 = sphi 0, %s120
      %s138 = sphi 0, %s138
      %s140 = sphi 0, %s138
      %s141 = sphi 0, %s140
      %s155 = sphi 0, %s141
      %s163 = sphi 0, %s165
      %s166 = sphi 0, %s163
      %s167 = sphi 0, %s166
      %s183 = sphi 0, %s167
    $region4: #{tpu_custom_call.1} parent=1 // loop_header_branch
      %23 = sbr.rel (%p21) target = $region8
    $region5: #{tpu_custom_call.1} parent=1 // loop_body
      %s25 = ssub.s32 %s20, 1
      %s26 = ssub.s32 %s20, 2
      %s33 = sadd.s32 1, %s28
      %p34 = scmp.ge.s32.totalorder %s33, 1
      %s35 = scalar_select %p34, 0, %s33
      %s36 = sadd.s32 1, %s27
      %s37 = scalar_select %p34, %s36, %s27
      %p38 = scmp.ge.s32.totalorder %s37, 2
      %s39 = scalar_select %p38, 0, %s37
      %s40 = ssub.s32 %s27, %s39
      %s41 = ssub.s32 %s28, %s35
      %s42 = sor.u32 %s40, %s41
      %p43 = scmp.eq.s32.totalorder %s42, 0
      %s45 = sadd.s32 %s44, 1
      %s46 = scalar_select %p43, %s44, %s45
      %p49 = pneg %p43
      %p50 = scmp.eq.s32.totalorder %s20, 1
      %p51 = por %p49, %p50
      %p52 = scmp.ne.s32.totalorder %s44, %s47
      %p53 = scmp.eq.s32.totalorder %s20, 0
      %p54 = por %p52, %p53
      %p55 = scmp.ne.s32.totalorder %s44, %s47
      %p56 = scmp.eq.s32.totalorder %s25, 1
      %p57 = por %p55, %p56
      %p58 = scmp.ne.s32.totalorder %s47, %s48
      %p59 = scmp.eq.s32.totalorder %s25, 0
      %p60 = por %p58, %p59
      %p61 = scmp.ne.s32.totalorder %s47, %s48
      %p62 = scmp.eq.s32.totalorder %s26, 1
      %p63 = por %p61, %p62
      %p65 = scmp.ne.s32.totalorder %s48, %s64
      %p66 = scmp.eq.s32.totalorder %s26, 0
      %p67 = por %p65, %p66
      %s68 = ssub.s32 %s27, %s39
      %s69 = ssub.s32 %s28, %s35
      %s70 = sor.u32 %s68, %s69
      %p71 = scmp.eq.s32.totalorder %s70, 0
      %s73 = sadd.s32 %s72, 1
      %s74 = scalar_select %p71, %s72, %s73
      %p77 = pneg %p71
      %p78 = scmp.eq.s32.totalorder %s20, 1
      %p79 = por %p77, %p78
      %p80 = scmp.ne.s32.totalorder %s72, %s75
      %p81 = scmp.eq.s32.totalorder %s20, 0
      %p82 = por %p80, %p81
      %p83 = scmp.ne.s32.totalorder %s72, %s75
      %p84 = scmp.eq.s32.totalorder %s25, 1
      %p85 = por %p83, %p84
      %p86 = scmp.ne.s32.totalorder %s75, %s76
      %p87 = scmp.eq.s32.totalorder %s25, 0
      %p88 = por %p86, %p87
      %p89 = scmp.ne.s32.totalorder %s75, %s76
      %p90 = scmp.eq.s32.totalorder %s26, 1
      %p91 = por %p89, %p90
      %p93 = scmp.ne.s32.totalorder %s76, %s92
      %p94 = scmp.eq.s32.totalorder %s26, 0
      %p95 = por %p93, %p94
      %s97 = sadd.s32 %s96, 1
      %p100 = scmp.eq.s32.totalorder %s20, 1
      %p101 = scmp.ne.s32.totalorder %s96, %s98
      %p102 = scmp.eq.s32.totalorder %s20, 0
      %p103 = por %p101, %p102
      %p104 = scmp.ne.s32.totalorder %s96, %s98
      %p105 = scmp.eq.s32.totalorder %s25, 1
      %p106 = por %p104, %p105
      %p107 = scmp.ne.s32.totalorder %s98, %s99
      %p108 = scmp.eq.s32.totalorder %s25, 0
      %p109 = por %p107, %p108
      %p110 = scmp.ne.s32.totalorder %s98, %s99
      %p111 = scmp.eq.s32.totalorder %s26, 1
      %p112 = por %p110, %p111
      %p114 = scmp.ne.s32.totalorder %s99, %s113
      %p115 = scmp.eq.s32.totalorder %s26, 0
      %p116 = por %p114, %p115
      %s118 = sadd.s32 %s117, 1
      %p121 = scmp.eq.s32.totalorder %s20, 1
      %p122 = scmp.ne.s32.totalorder %s117, %s119
      %p123 = scmp.eq.s32.totalorder %s20, 0
      %p124 = por %p122, %p123
      %p125 = scmp.ne.s32.totalorder %s117, %s119
      %p126 = scmp.eq.s32.totalorder %s25, 1
      %p127 = por %p125, %p126
      %p128 = scmp.ne.s32.totalorder %s119, %s120
      %p129 = scmp.eq.s32.totalorder %s25, 0
      %p130 = por %p128, %p129
      %p131 = scmp.ne.s32.totalorder %s119, %s120
      %p132 = scmp.eq.s32.totalorder %s26, 1
      %p133 = por %p131, %p132
      %p135 = scmp.ne.s32.totalorder %s120, %s134
      %p136 = scmp.eq.s32.totalorder %s26, 0
      %p137 = por %p135, %p136
      %s139 = sadd.s32 %s138, 1
      %p142 = scmp.eq.s32.totalorder %s20, 1
      %p143 = scmp.ne.s32.totalorder %s138, %s140
      %p144 = scmp.eq.s32.totalorder %s20, 0
      %p145 = por %p143, %p144
      %p146 = scmp.ne.s32.totalorder %s138, %s140
      %p147 = scmp.eq.s32.totalorder %s25, 1
      %p148 = por %p146, %p147
      %p149 = scmp.ne.s32.totalorder %s140, %s141
      %p150 = scmp.eq.s32.totalorder %s25, 0
      %p151 = por %p149, %p150
      %p152 = scmp.ne.s32.totalorder %s140, %s141
      %p153 = scmp.eq.s32.totalorder %s26, 1
      %p154 = por %p152, %p153
      %p156 = scmp.ne.s32.totalorder %s141, %s155
      %p157 = scmp.eq.s32.totalorder %s26, 0
      %p158 = por %p156, %p157
      %s159 = ssub.s32 %s27, %s39
      %s160 = ssub.s32 %s28, %s35
      %s161 = sor.u32 %s159, %s160
      %p162 = scmp.eq.s32.totalorder %s161, 0
      %s164 = sadd.s32 %s163, 1
      %s165 = scalar_select %p162, %s163, %s164
      %p168 = pneg %p162
      %p169 = scmp.eq.s32.totalorder %s20, 1
      %p170 = por %p168, %p169
      %p171 = scmp.ne.s32.totalorder %s163, %s166
      %p172 = scmp.eq.s32.totalorder %s20, 0
      %p173 = por %p171, %p172
      %p174 = scmp.ne.s32.totalorder %s163, %s166
      %p175 = scmp.eq.s32.totalorder %s25, 1
      %p176 = por %p174, %p175
      %p177 = scmp.ne.s32.totalorder %s166, %s167
      %p178 = scmp.eq.s32.totalorder %s25, 0
      %p179 = por %p177, %p178
      %p180 = scmp.ne.s32.totalorder %s166, %s167
      %p181 = scmp.eq.s32.totalorder %s26, 1
      %p182 = por %p180, %p181
      %p184 = scmp.ne.s32.totalorder %s167, %s183
      %p185 = scmp.eq.s32.totalorder %s26, 0
      %p186 = por %p184, %p185
      %p187 = scmp.le.s32.totalorder 1, %s20
      %p188 = scmp.lt.s32.totalorder %s20, 3
      %p189 = pnand %p187, %p188
      %p190 = pneg %p189
      // Predicated region
      $region9: #{tpu_custom_call.1} parent=5 // pred_check
        _
      $region10: #{tpu_custom_call.1} parent=5 // pred_check_branch
        %192 = sbr.rel (%p189) target = $region12
      $region11: #{tpu_custom_call.1} parent=5 // pred_region
        %s193 = ssub.s32 %s20, 1
        // Predicated region
        $region13: #{tpu_custom_call.1} parent=11 // pred_check
          %p194 = pneg %p109
        $region14: #{tpu_custom_call.1} parent=11 // pred_check_branch
          %196 = sbr.rel (%p194) target = $region16
        $region15: #{tpu_custom_call.1} parent=11 // pred_region
          _
        $region16: #{tpu_custom_call.1} parent=11 // pred_fallthru
          _
        // Predicated region
        $region17: #{tpu_custom_call.1} parent=11 // pred_check
          %p197 = pneg %p130
        $region18: #{tpu_custom_call.1} parent=11 // pred_check_branch
          %199 = sbr.rel (%p197) target = $region20
        $region19: #{tpu_custom_call.1} parent=11 // pred_region
          %s201 = ssub.s32 256, 256
          %202 = vsyncadd [#allocation6], %s201
          %s203 = sshll.u32 [#allocation7], 4
          %s204 = int_to_ptr.vmem [resolvable:$true] %s203
          %209 = dma.hbm_to_vmem [thread:$0]  %s3, 256, %s204, [#allocation6], 128, 128, 8
        $region20: #{tpu_custom_call.1} parent=11 // pred_fallthru
          _
        // Predicated region
        $region21: #{tpu_custom_call.1} parent=11 // pred_check
          %p210 = pneg %p151
        $region22: #{tpu_custom_call.1} parent=11 // pred_check_branch
          %212 = sbr.rel (%p210) target = $region24
        $region23: #{tpu_custom_call.1} parent=11 // pred_region
          _
        $region24: #{tpu_custom_call.1} parent=11 // pred_fallthru
          _
      $region12: #{tpu_custom_call.1} parent=5 // pred_fallthru
        _
      %p213 = scmp.lt.s32.totalorder %s20, 2
      // Predicated region
      $region25: #{tpu_custom_call.1} parent=5 // pred_check
        %p214 = pneg %p213
      $region26: #{tpu_custom_call.1} parent=5 // pred_check_branch
        %216 = sbr.rel (%p214) target = $region28
      $region27: #{tpu_custom_call.1} parent=5 // pred_region
        // Predicated region
        $region29: #{tpu_custom_call.1} parent=27 // pred_check
          %p217 = pneg %p54
        $region30: #{tpu_custom_call.1} parent=27 // pred_check_branch
          %219 = sbr.rel (%p217) target = $region32
        $region31: #{tpu_custom_call.1} parent=27 // pred_region
          %s220 = sand.u32 %s44, 1
          %s221 = scalar_lea.sflag [#allocation3], %s220
          %s222 = sand.u32 %s44, 1
          %s223 = smul.addr %s222, 64
          %s224 = scalar_lea.vmem [#allocation2], %s223
          %s225 = smul.u32 4, %s28
          %s227 = ssub.s32 1024, 1024
          %228 = vsyncadd %s221, %s227
          %s229 = smul.addr %s27, 8
          %s230 = sadd.s32 %s225, %s229
          %s231 = smul.addr %s230, 128
          %s232 = scalar_lea.hbm %s0, %s231
          %s233 = sshll.u32 %s224, 4
          %s234 = int_to_ptr.vmem [resolvable:$true] %s233
          %239 = dma.hbm_to_vmem [thread:$0]  %s232, 1024, %s234, %s221, 512, 512, 32
        $region32: #{tpu_custom_call.1} parent=27 // pred_fallthru
          _
        // Predicated region
        $region33: #{tpu_custom_call.1} parent=27 // pred_check
          %p240 = pneg %p82
        $region34: #{tpu_custom_call.1} parent=27 // pred_check_branch
          %242 = sbr.rel (%p240) target = $region36
        $region35: #{tpu_custom_call.1} parent=27 // pred_region
          %s243 = sand.u32 %s20, 1
          %s244 = scalar_lea.sflag [#allocation6], %s243
          %s245 = sand.u32 %s72, 1
          %s246 = smul.addr %s245, 64
          %s247 = scalar_lea.vmem [#allocation5], %s246
          %s248 = smul.u32 4, %s28
          %s250 = ssub.s32 1024, 1024
          %251 = vsyncadd %s244, %s250
          %s252 = smul.addr %s27, 8
          %s253 = sadd.s32 %s248, %s252
          %s254 = smul.addr %s253, 128
          %s255 = scalar_lea.hbm %s1, %s254
          %s256 = sshll.u32 %s247, 4
          %s257 = int_to_ptr.vmem [resolvable:$true] %s256
          %262 = dma.hbm_to_vmem [thread:$0]  %s255, 1024, %s257, %s244, 512, 512, 32
        $region36: #{tpu_custom_call.1} parent=27 // pred_fallthru
          _
      $region28: #{tpu_custom_call.1} parent=5 // pred_fallthru
        _
      %p263 = scmp.le.s32.totalorder 1, %s20
      %p264 = scmp.lt.s32.totalorder %s20, 3
      %p265 = pnand %p263, %p264
      %p266 = pneg %p265
      // Predicated region
      $region37: #{tpu_custom_call.1} parent=5 // pred_check
        _
      $region38: #{tpu_custom_call.1} parent=5 // pred_check_branch
        %268 = sbr.rel (%p265) target = $region40
      $region39: #{tpu_custom_call.1} parent=5 // pred_region
        %s269 = ssub.s32 %s20, 1
        %s270 = sand.u32 %s47, 1
        %s271 = scalar_lea.sflag [#allocation3], %s270
        %s272 = sand.u32 %s47, 1
        %s273 = smul.addr %s272, 64
        %s274 = scalar_lea.vmem [#allocation2], %s273
        // Predicated region
        $region41: #{tpu_custom_call.1} parent=39 // pred_check
          %p275 = pneg %p60
        $region42: #{tpu_custom_call.1} parent=39 // pred_check_branch
          %277 = sbr.rel (%p275) target = $region44
        $region43: #{tpu_custom_call.1} parent=39 // pred_region
          %278 = dma.done %s271, 1024
        $region44: #{tpu_custom_call.1} parent=39 // pred_fallthru
          _
        %s279 = sand.u32 %s25, 1
        %s280 = scalar_lea.sflag [#allocation6], %s279
        %s281 = sand.u32 %s75, 1
        %s282 = smul.addr %s281, 64
        %s283 = scalar_lea.vmem [#allocation5], %s282
        // Predicated region
        $region45: #{tpu_custom_call.1} parent=39 // pred_check
          %p284 = pneg %p88
        $region46: #{tpu_custom_call.1} parent=39 // pred_check_branch
          %286 = sbr.rel (%p284) target = $region48
        $region47: #{tpu_custom_call.1} parent=39 // pred_region
          %287 = dma.done %s280, 1024
        $region48: #{tpu_custom_call.1} parent=39 // pred_fallthru
          _
        // Predicated region
        $region49: #{tpu_custom_call.1} parent=39 // pred_check
          %p288 = pneg %p130
        $region50: #{tpu_custom_call.1} parent=39 // pred_check_branch
          %290 = sbr.rel (%p288) target = $region52
        $region51: #{tpu_custom_call.1} parent=39 // pred_region
          %291 = dma.done [#allocation6], 256
        $region52: #{tpu_custom_call.1} parent=39 // pred_fallthru
          _
        %s292 = sand.u32 %s47, 1
        %s293 = scalar_lea.sflag [#allocation3], %s292
        %s294 = sand.u32 %s47, 1
        %s295 = smul.addr %s294, 64
        %s296 = scalar_lea.vmem [#allocation2], %s295
        %p297 = pneg %p60
        %p298 = pneg %p57
        %s299 = sand.u32 %s25, 1
        %s300 = scalar_lea.sflag [#allocation6], %s299
        %s301 = sand.u32 %s75, 1
        %s302 = smul.addr %s301, 64
        %s303 = scalar_lea.vmem [#allocation5], %s302
        %p304 = pneg %p88
        %p305 = pneg %p85
        %p306 = pneg %p109
        %p307 = pneg %p106
        %p308 = pneg %p130
        %p309 = pneg %p127
        %p310 = pneg %p151
        %p311 = pneg %p148
        %p312 = pneg %p179
        %p313 = pneg %p176
        %s314 = sand.u32 %s166, 1
        %s315 = scalar_lea.sflag [#allocation4], %s314
        %s316 = sand.u32 %s166, 1
        %s317 = smul.addr %s316, 64
        %s318 = scalar_lea.vmem [#allocation8], %s317
        %s319 = smul.u32 4, %s30
        %s320 = smul.u32 4, %s30
        %s321 = smul.u32 4, %s30
        %v322 = vld [vmem:[%s274] sm:$0xff]
        %v323 = vld [vmem:[%s274 + $0x8] sm:$0xff]
        %v324 = vld [vmem:[%s274 + $0x10] sm:$0xff]
        %v325 = vld [vmem:[%s274 + $0x18] sm:$0xff]
        %v326 = vld [vmem:[%s274 + $0x20] sm:$0xff]
        %v327 = vld [vmem:[%s274 + $0x28] sm:$0xff]
        %v328 = vld [vmem:[%s274 + $0x30] sm:$0xff]
        %v329 = vld [vmem:[%s274 + $0x38] sm:$0xff]
        %v330 = vld [vmem:[%s283] sm:$0xff]
        %v331 = vld [vmem:[%s283 + $0x8] sm:$0xff]
        %v332 = vld [vmem:[%s283 + $0x10] sm:$0xff]
        %v333 = vld [vmem:[%s283 + $0x18] sm:$0xff]
        %v334 = vld [vmem:[%s283 + $0x20] sm:$0xff]
        %v335 = vld [vmem:[%s283 + $0x28] sm:$0xff]
        %v336 = vld [vmem:[%s283 + $0x30] sm:$0xff]
        %v337 = vld [vmem:[%s283 + $0x38] sm:$0xff]
        %v338 = vld [vmem:[%s2] sm:$0xff]
        %v339 = vld [vmem:[%s2 + $0x8] sm:$0xff]
        %v340 = vld [vmem:[#allocation7] sm:$0xff]
        %v341 = vld [vmem:[#allocation7 + $0x8] sm:$0xff]
        %vm342 = vcmask 130048
        %v344 = vsel %vm342, %v340, 0
        %v347 = vsel %vm342, %v341, 0
        %349 = vmatprep.subr.mxu0 0.0
        %350 = vmatpush1.msra.mxu0 0.0
        %351 = vmatprep.subr.mxu0 0.0
        %352 = vmatpush1.msra.mxu0 0.0
        %353 = vmatprep.subr.mxu0 0.0
        %354 = vmatpush1.msra.mxu0 0.0
        %355 = vmatprep.subr.mxu0 0.0
        %356 = vmatpush1.msra.mxu0 0.0
        %357 = vmatprep.subr.mxu0 0.0
        %358 = vmatpush1.msra.mxu0 0.0
        %359 = vmatprep.subr.mxu0 0.0
        %360 = vmatpush1.msra.mxu0 0.0
        %361 = vmatprep.subr.mxu0 0.0
        %362 = vmatpush1.msra.mxu0 0.0
        %363 = vmatprep.subr.mxu0 0.0
        %364 = vmatpush1.msra.mxu0 0.0
        %365 = vmatprep.subr.mxu0 0.0
        %366 = vmatpush1.msra.mxu0 0.0
        %367 = vmatprep.subr.mxu0 0.0
        %368 = vmatpush1.msra.mxu0 0.0
        %369 = vmatprep.subr.mxu0 0.0
        %370 = vmatpush1.msra.mxu0 0.0
        %371 = vmatprep.subr.mxu0 0.0
        %372 = vmatpush1.msra.mxu0 0.0
        %373 = vmatprep.subr.mxu0 0.0
        %374 = vmatpush1.msra.mxu0 0.0
        %375 = vmatprep.subr.mxu0 0.0
        %376 = vmatpush1.msra.mxu0 0.0
        %377 = vmatprep.subr.mxu0 %v335
        %378 = vmatpush1.msra.mxu0 %v334
        %379 = vmatprep.subr.mxu0 %v331
        %380 = vmatpush1.msra.mxu0 %v330
        %381 = vmatprep.subr.mxu0 0.0
        %382 = vmatpush2.msra.mxu0 0.0
        %383 = vmatprep.subr.mxu0 0.0
        %384 = vmatpush2.msra.mxu0 0.0
        %385 = vmatprep.subr.mxu0 0.0
        %386 = vmatpush2.msra.mxu0 0.0
        %387 = vmatprep.subr.mxu0 0.0
        %388 = vmatpush2.msra.mxu0 0.0
        %389 = vmatprep.subr.mxu0 0.0
        %390 = vmatpush2.msra.mxu0 0.0
        %391 = vmatprep.subr.mxu0 0.0
        %392 = vmatpush2.msra.mxu0 0.0
        %393 = vmatprep.subr.mxu0 0.0
        %394 = vmatpush2.msra.mxu0 0.0
        %395 = vmatprep.subr.mxu0 0.0
        %396 = vmatpush2.msra.mxu0 0.0
        %397 = vmatprep.subr.mxu0 0.0
        %398 = vmatpush2.msra.mxu0 0.0
        %399 = vmatprep.subr.mxu0 0.0
        %400 = vmatpush2.msra.mxu0 0.0
        %401 = vmatprep.subr.mxu0 0.0
        %402 = vmatpush2.msra.mxu0 0.0
        %403 = vmatprep.subr.mxu0 0.0
        %404 = vmatpush2.msra.mxu0 0.0
        %405 = vmatprep.subr.mxu0 0.0
        %406 = vmatpush2.msra.mxu0 0.0
        %407 = vmatprep.subr.mxu0 0.0
        %408 = vmatpush2.msra.mxu0 0.0
        %409 = vmatprep.subr.mxu0 0.0
        %410 = vmatpush2.msra.mxu0 0.0
        %411 = vmatprep.subr.mxu0 0.0
        %412 = vmatpush2.msra.mxu0 0.0
        %413 = vmatprep.mubr.f32.mxu0 0.0
        %414 = vmatmul.mubr.f32.gmra.mxu0 %v344
        %v415 = vpop.f32.mrf.mxu0
        %v416 = vadd.f32 0.0, %v415
        %v417 = vpop.f32.mrf.mxu0
        %v418 = vadd.f32 0.0, %v417
        %419 = vmatprep.mubr.f32.mxu0 0.0
        %420 = vmatmul.mubr.f32.gmra.mxu0 %v347
        %v421 = vpop.f32.mrf.mxu0
        %v422 = vadd.f32 0.0, %v421
        %v423 = vpop.f32.mrf.mxu0
        %v424 = vadd.f32 0.0, %v423
        %425 = vdwg.mxu0
        %426 = vmatprep.subr.mxu0 0.0
        %427 = vmatpush1.msra.mxu0 0.0
        %428 = vmatprep.subr.mxu0 0.0
        %429 = vmatpush1.msra.mxu0 0.0
        %430 = vmatprep.subr.mxu0 0.0
        %431 = vmatpush1.msra.mxu0 0.0
        %432 = vmatprep.subr.mxu0 0.0
        %433 = vmatpush1.msra.mxu0 0.0
        %434 = vmatprep.subr.mxu0 0.0
        %435 = vmatpush1.msra.mxu0 0.0
        %436 = vmatprep.subr.mxu0 0.0
        %437 = vmatpush1.msra.mxu0 0.0
        %438 = vmatprep.subr.mxu0 0.0
        %439 = vmatpush1.msra.mxu0 0.0
        %440 = vmatprep.subr.mxu0 0.0
        %441 = vmatpush1.msra.mxu0 0.0
        %442 = vmatprep.subr.mxu0 0.0
        %443 = vmatpush1.msra.mxu0 0.0
        %444 = vmatprep.subr.mxu0 0.0
        %445 = vmatpush1.msra.mxu0 0.0
        %446 = vmatprep.subr.mxu0 0.0
        %447 = vmatpush1.msra.mxu0 0.0
        %448 = vmatprep.subr.mxu0 0.0
        %449 = vmatpush1.msra.mxu0 0.0
        %450 = vmatprep.subr.mxu0 0.0
        %451 = vmatpush1.msra.mxu0 0.0
        %452 = vmatprep.subr.mxu0 0.0
        %453 = vmatpush1.msra.mxu0 0.0
        %454 = vmatprep.subr.mxu0 %v337
        %455 = vmatpush1.msra.mxu0 %v336
        %456 = vmatprep.subr.mxu0 %v333
        %457 = vmatpush1.msra.mxu0 %v332
        %458 = vmatprep.subr.mxu0 0.0
        %459 = vmatpush2.msra.mxu0 0.0
        %460 = vmatprep.subr.mxu0 0.0
        %461 = vmatpush2.msra.mxu0 0.0
        %462 = vmatprep.subr.mxu0 0.0
        %463 = vmatpush2.msra.mxu0 0.0
        %464 = vmatprep.subr.mxu0 0.0
        %465 = vmatpush2.msra.mxu0 0.0
        %466 = vmatprep.subr.mxu0 0.0
        %467 = vmatpush2.msra.mxu0 0.0
        %468 = vmatprep.subr.mxu0 0.0
        %469 = vmatpush2.msra.mxu0 0.0
        %470 = vmatprep.subr.mxu0 0.0
        %471 = vmatpush2.msra.mxu0 0.0
        %472 = vmatprep.subr.mxu0 0.0
        %473 = vmatpush2.msra.mxu0 0.0
        %474 = vmatprep.subr.mxu0 0.0
        %475 = vmatpush2.msra.mxu0 0.0
        %476 = vmatprep.subr.mxu0 0.0
        %477 = vmatpush2.msra.mxu0 0.0
        %478 = vmatprep.subr.mxu0 0.0
        %479 = vmatpush2.msra.mxu0 0.0
        %480 = vmatprep.subr.mxu0 0.0
        %481 = vmatpush2.msra.mxu0 0.0
        %482 = vmatprep.subr.mxu0 0.0
        %483 = vmatpush2.msra.mxu0 0.0
        %484 = vmatprep.subr.mxu0 0.0
        %485 = vmatpush2.msra.mxu0 0.0
        %486 = vmatprep.subr.mxu0 0.0
        %487 = vmatpush2.msra.mxu0 0.0
        %488 = vmatprep.subr.mxu0 0.0
        %489 = vmatpush2.msra.mxu0 0.0
        %490 = vmatprep.mubr.f32.mxu0 0.0
        %491 = vmatmul.mubr.f32.gmra.mxu0 %v344
        %v492 = vpop.f32.mrf.mxu0
        %v493 = vadd.f32 0.0, %v492
        %v494 = vpop.f32.mrf.mxu0
        %v495 = vadd.f32 0.0, %v494
        %496 = vmatprep.mubr.f32.mxu0 0.0
        %497 = vmatmul.mubr.f32.gmra.mxu0 %v347
        %v498 = vpop.f32.mrf.mxu0
        %v499 = vadd.f32 0.0, %v498
        %v500 = vpop.f32.mrf.mxu0
        %v501 = vadd.f32 0.0, %v500
        %502 = vdwg.mxu0
        %v504 = vsel %vm342, %v338, 0
        %v507 = vsel %vm342, %v339, 0
        %509 = vmatprep.subr.mxu0 0.0
        %510 = vmatpush1.msra.mxu0 0.0
        %511 = vmatprep.subr.mxu0 0.0
        %512 = vmatpush1.msra.mxu0 0.0
        %513 = vmatprep.subr.mxu0 0.0
        %514 = vmatpush1.msra.mxu0 0.0
        %515 = vmatprep.subr.mxu0 0.0
        %516 = vmatpush1.msra.mxu0 0.0
        %517 = vmatprep.subr.mxu0 0.0
        %518 = vmatpush1.msra.mxu0 0.0
        %519 = vmatprep.subr.mxu0 0.0
        %520 = vmatpush1.msra.mxu0 0.0
        %521 = vmatprep.subr.mxu0 0.0
        %522 = vmatpush1.msra.mxu0 0.0
        %523 = vmatprep.subr.mxu0 0.0
        %524 = vmatpush1.msra.mxu0 0.0
        %525 = vmatprep.subr.mxu0 0.0
        %526 = vmatpush1.msra.mxu0 0.0
        %527 = vmatprep.subr.mxu0 0.0
        %528 = vmatpush1.msra.mxu0 0.0
        %529 = vmatprep.subr.mxu0 0.0
        %530 = vmatpush1.msra.mxu0 0.0
        %531 = vmatprep.subr.mxu0 0.0
        %532 = vmatpush1.msra.mxu0 0.0
        %533 = vmatprep.subr.mxu0 0.0
        %534 = vmatpush1.msra.mxu0 0.0
        %535 = vmatprep.subr.mxu0 0.0
        %536 = vmatpush1.msra.mxu0 0.0
        %537 = vmatprep.subr.mxu0 %v327
        %538 = vmatpush1.msra.mxu0 %v326
        %539 = vmatprep.subr.mxu0 %v323
        %540 = vmatpush1.msra.mxu0 %v322
        %541 = vmatprep.subr.mxu0 0.0
        %542 = vmatpush2.msra.mxu0 0.0
        %543 = vmatprep.subr.mxu0 0.0
        %544 = vmatpush2.msra.mxu0 0.0
        %545 = vmatprep.subr.mxu0 0.0
        %546 = vmatpush2.msra.mxu0 0.0
        %547 = vmatprep.subr.mxu0 0.0
        %548 = vmatpush2.msra.mxu0 0.0
        %549 = vmatprep.subr.mxu0 0.0
        %550 = vmatpush2.msra.mxu0 0.0
        %551 = vmatprep.subr.mxu0 0.0
        %552 = vmatpush2.msra.mxu0 0.0
        %553 = vmatprep.subr.mxu0 0.0
        %554 = vmatpush2.msra.mxu0 0.0
        %555 = vmatprep.subr.mxu0 0.0
        %556 = vmatpush2.msra.mxu0 0.0
        %557 = vmatprep.subr.mxu0 0.0
        %558 = vmatpush2.msra.mxu0 0.0
        %559 = vmatprep.subr.mxu0 0.0
        %560 = vmatpush2.msra.mxu0 0.0
        %561 = vmatprep.subr.mxu0 0.0
        %562 = vmatpush2.msra.mxu0 0.0
        %563 = vmatprep.subr.mxu0 0.0
        %564 = vmatpush2.msra.mxu0 0.0
        %565 = vmatprep.subr.mxu0 0.0
        %566 = vmatpush2.msra.mxu0 0.0
        %567 = vmatprep.subr.mxu0 0.0
        %568 = vmatpush2.msra.mxu0 0.0
        %569 = vmatprep.subr.mxu0 0.0
        %570 = vmatpush2.msra.mxu0 0.0
        %571 = vmatprep.subr.mxu0 0.0
        %572 = vmatpush2.msra.mxu0 0.0
        %573 = vmatprep.mubr.f32.mxu0 0.0
        %574 = vmatmul.mubr.f32.gmra.mxu0 %v504
        %v575 = vpop.f32.mrf.mxu0
        %v576 = vadd.f32 %v416, %v575
        %v577 = vpop.f32.mrf.mxu0
        %v578 = vadd.f32 %v418, %v577
        %579 = vmatprep.mubr.f32.mxu0 0.0
        %580 = vmatmul.mubr.f32.gmra.mxu0 %v507
        %v581 = vpop.f32.mrf.mxu0
        %v582 = vadd.f32 %v422, %v581
        %v583 = vpop.f32.mrf.mxu0
        %v584 = vadd.f32 %v424, %v583
        %585 = vdwg.mxu0
        %586 = vmatprep.subr.mxu0 0.0
        %587 = vmatpush1.msra.mxu0 0.0
        %588 = vmatprep.subr.mxu0 0.0
        %589 = vmatpush1.msra.mxu0 0.0
        %590 = vmatprep.subr.mxu0 0.0
        %591 = vmatpush1.msra.mxu0 0.0
        %592 = vmatprep.subr.mxu0 0.0
        %593 = vmatpush1.msra.mxu0 0.0
        %594 = vmatprep.subr.mxu0 0.0
        %595 = vmatpush1.msra.mxu0 0.0
        %596 = vmatprep.subr.mxu0 0.0
        %597 = vmatpush1.msra.mxu0 0.0
        %598 = vmatprep.subr.mxu0 0.0
        %599 = vmatpush1.msra.mxu0 0.0
        %600 = vmatprep.subr.mxu0 0.0
        %601 = vmatpush1.msra.mxu0 0.0
        %602 = vmatprep.subr.mxu0 0.0
        %603 = vmatpush1.msra.mxu0 0.0
        %604 = vmatprep.subr.mxu0 0.0
        %605 = vmatpush1.msra.mxu0 0.0
        %606 = vmatprep.subr.mxu0 0.0
        %607 = vmatpush1.msra.mxu0 0.0
        %608 = vmatprep.subr.mxu0 0.0
        %609 = vmatpush1.msra.mxu0 0.0
        %610 = vmatprep.subr.mxu0 0.0
        %611 = vmatpush1.msra.mxu0 0.0
        %612 = vmatprep.subr.mxu0 0.0
        %613 = vmatpush1.msra.mxu0 0.0
        %614 = vmatprep.subr.mxu0 %v329
        %615 = vmatpush1.msra.mxu0 %v328
        %616 = vmatprep.subr.mxu0 %v325
        %617 = vmatpush1.msra.mxu0 %v324
        %618 = vmatprep.subr.mxu0 0.0
        %619 = vmatpush2.msra.mxu0 0.0
        %620 = vmatprep.subr.mxu0 0.0
        %621 = vmatpush2.msra.mxu0 0.0
        %622 = vmatprep.subr.mxu0 0.0
        %623 = vmatpush2.msra.mxu0 0.0
        %624 = vmatprep.subr.mxu0 0.0
        %625 = vmatpush2.msra.mxu0 0.0
        %626 = vmatprep.subr.mxu0 0.0
        %627 = vmatpush2.msra.mxu0 0.0
        %628 = vmatprep.subr.mxu0 0.0
        %629 = vmatpush2.msra.mxu0 0.0
        %630 = vmatprep.subr.mxu0 0.0
        %631 = vmatpush2.msra.mxu0 0.0
        %632 = vmatprep.subr.mxu0 0.0
        %633 = vmatpush2.msra.mxu0 0.0
        %634 = vmatprep.subr.mxu0 0.0
        %635 = vmatpush2.msra.mxu0 0.0
        %636 = vmatprep.subr.mxu0 0.0
        %637 = vmatpush2.msra.mxu0 0.0
        %638 = vmatprep.subr.mxu0 0.0
        %639 = vmatpush2.msra.mxu0 0.0
        %640 = vmatprep.subr.mxu0 0.0
        %641 = vmatpush2.msra.mxu0 0.0
        %642 = vmatprep.subr.mxu0 0.0
        %643 = vmatpush2.msra.mxu0 0.0
        %644 = vmatprep.subr.mxu0 0.0
        %645 = vmatpush2.msra.mxu0 0.0
        %646 = vmatprep.subr.mxu0 0.0
        %647 = vmatpush2.msra.mxu0 0.0
        %648 = vmatprep.subr.mxu0 0.0
        %649 = vmatpush2.msra.mxu0 0.0
        %650 = vmatprep.mubr.f32.mxu0 0.0
        %651 = vmatmul.mubr.f32.gmra.mxu0 %v504
        %v652 = vpop.f32.mrf.mxu0
        %v653 = vadd.f32 %v493, %v652
        %v654 = vpop.f32.mrf.mxu0
        %v655 = vadd.f32 %v495, %v654
        %656 = vmatprep.mubr.f32.mxu0 0.0
        %657 = vmatmul.mubr.f32.gmra.mxu0 %v507
        %v658 = vpop.f32.mrf.mxu0
        %v659 = vadd.f32 %v499, %v658
        %v660 = vpop.f32.mrf.mxu0
        %v661 = vadd.f32 %v501, %v660
        %662 = vdwg.mxu0
        %v663 = vld [vmem:[%s4] sm:$0xff]
        %v664 = vld [vmem:[%s4 + $0x8] sm:$0xff]
        %666 = vset.pattern.permute.xlu0 0
        %667 = vperm.xlu0 %666, %v663
        %v668 = vpop.permute.xlu0 %667
        %671 = vset.pattern.permute.xlu0 0
        %672 = vperm.xlu0 %671, %v664
        %v673 = vpop.permute.xlu0 %672
        %v675 = vadd.f32 %v576, %v668
        %v676 = vadd.f32 %v578, %v668
        %v677 = vadd.f32 %v653, %v668
        %v678 = vadd.f32 %v655, %v668
        %v679 = vadd.f32 %v582, %v673
        %v680 = vadd.f32 %v584, %v673
        %v681 = vadd.f32 %v659, %v673
        %v682 = vadd.f32 %v661, %v673
        %683 = vst [vmem:[%s318] sm:$0xff] %v675
        %684 = vst [vmem:[%s318 + $0x8] sm:$0xff] %v676
        %685 = vst [vmem:[%s318 + $0x10] sm:$0xff] %v677
        %686 = vst [vmem:[%s318 + $0x18] sm:$0xff] %v678
        %687 = vst [vmem:[%s318 + $0x20] sm:$0xff] %v679
        %688 = vst [vmem:[%s318 + $0x28] sm:$0xff] %v680
        %689 = vst [vmem:[%s318 + $0x30] sm:$0xff] %v681
        %690 = vst [vmem:[%s318 + $0x38] sm:$0xff] %v682
        %s691 = sand.u32 %s166, 1
        %s692 = scalar_lea.sflag [#allocation4], %s691
        %s693 = sand.u32 %s166, 1
        %s694 = smul.addr %s693, 64
        %s695 = scalar_lea.vmem [#allocation8], %s694
        // Predicated region
        $region53: #{tpu_custom_call.1} parent=39 // pred_check
          %p696 = pneg %p176
        $region54: #{tpu_custom_call.1} parent=39 // pred_check_branch
          %698 = sbr.rel (%p696) target = $region56
        $region55: #{tpu_custom_call.1} parent=39 // pred_region
          %s699 = smul.u32 4, %s30
          %s701 = ssub.s32 1024, 1024
          %702 = vsyncadd %s692, %s701
          %s703 = smul.addr %s29, 8
          %s704 = sadd.s32 %s699, %s703
          %s705 = smul.addr %s704, 128
          %s706 = scalar_lea.hbm %s5, %s705
          %s707 = sshll.u32 %s695, 4
          %s708 = int_to_ptr.vmem [resolvable:$true] %s707
          %713 = dma.vmem_to_hbm [thread:$0]  %s708, 1024, %s706, %s692, 512, 512, 32
        $region56: #{tpu_custom_call.1} parent=39 // pred_fallthru
          _
      $region40: #{tpu_custom_call.1} parent=5 // pred_fallthru
        _
      %p714 = scmp.le.s32.totalorder 2, %s20
      // Predicated region
      $region57: #{tpu_custom_call.1} parent=5 // pred_check
        %p715 = pneg %p714
      $region58: #{tpu_custom_call.1} parent=5 // pred_check_branch
        %717 = sbr.rel (%p715) target = $region60
      $region59: #{tpu_custom_call.1} parent=5 // pred_region
        %s718 = ssub.s32 %s20, 2
        // Predicated region
        $region61: #{tpu_custom_call.1} parent=59 // pred_check
          %p719 = pneg %p182
        $region62: #{tpu_custom_call.1} parent=59 // pred_check_branch
          %721 = sbr.rel (%p719) target = $region64
        $region63: #{tpu_custom_call.1} parent=59 // pred_region
          %s722 = sand.u32 %s167, 1
          %s723 = scalar_lea.sflag [#allocation4], %s722
          %s724 = sand.u32 %s167, 1
          %s725 = smul.addr %s724, 64
          %s726 = scalar_lea.vmem [#allocation8], %s725
          %727 = dma.done %s723, 1024
        $region64: #{tpu_custom_call.1} parent=59 // pred_fallthru
          _
      $region60: #{tpu_custom_call.1} parent=5 // pred_fallthru
        _
    $region6: #{tpu_custom_call.1} parent=1 // loop_footer
      %s24 = sadd.s32 1, %s20
    $region7: #{tpu_custom_call.1} parent=1 // loop_footer_branch
      %19 = sbr.rel target = $region3
    $region8: #{tpu_custom_call.1} parent=1 // loop_exit
      _
    %728 = vsyncpa [#allocation3], 1
    %s729 = scalar_lea.sflag [#allocation3], 1
    %730 = vsyncpa %s729, 1
    %731 = vsyncpa [#allocation6], 1
    %s732 = scalar_lea.sflag [#allocation6], 1
    %733 = vsyncpa %s732, 1
    %734 = vsyncpa [#allocation4], 1
    %s735 = scalar_lea.sflag [#allocation4], 1
    %736 = vsyncpa %s735, 1

</llo_original>
